<compile_context>
chip_gen: v6e
topology: v6e:2x2x1
jax: 0.10.0
libtpu: 0.0.40
codegen_flags: <defaults>
</compile_context>

<pallas_src>
import jax
import jax.numpy as jnp
from jax.experimental import pallas as pl
from jax.experimental.pallas import tpu as pltpu

_TARGET_BLOCK_BYTES = 2 << 20   # padded f32 footprint per input per pipeline buffer
_VMEM_LIMIT_BYTES = 48 << 20    # explicit scoped-VMEM limit (safe on v5e/v6e/v7x)


def _choose_layout(total, w):
    """Pick an (n_rows, c) 2D slab, preferring a lane-dense (multiple-of-128) last dim."""
    if total % 128 == 0:
        for c in (1024, 512, 256, 128):
            if total % c == 0:
                return total // c, c
    # Fallback: keep the original last dim (masked lanes, but always legal).
    return total // w, w


def _choose_tile_rows(n_rows, c):
    """Rows per block, sized against the lane-padded VMEM footprint."""
    padded_c = ((c + 127) // 128) * 128            # VMEM pads the lane dim to 128
    cand = _TARGET_BLOCK_BYTES // (padded_c * 4)   # conservative 4 B/elem
    cand = max(32, (cand // 32) * 32)              # dense for packed sub-32-bit dtypes
    if cand >= n_rows:
        return n_rows                              # one full-extent block (always legal)
    return cand


def _make_loss_kernel(n_rows, tile_rows, c, num_blocks):
    ragged = (n_rows % tile_rows) != 0             # static

    def _partial_sum(val):
        return jnp.sum(val, axis=0, keepdims=True)  # (1, c) per-block partial

    def kernel(gr_ref, ga_ref, pr_ref, pa_ref, cm_ref, out_ref):
        gr = gr_ref[...].astype(jnp.float32)
        ga = ga_ref[...].astype(jnp.float32)
        pr = pr_ref[...].astype(jnp.float32)
        pa = pa_ref[...].astype(jnp.float32)
        cm = cm_ref[...].astype(jnp.float32)

        dr = gr - pr
        da = ga - pa
        val = (dr * dr + da * da) * cm

        if not ragged:
            out_ref[...] = _partial_sum(val)
        else:
            # Only the final (overhanging) block pays for the mask.
            is_tail = pl.program_id(0) == (num_blocks - 1)

            @pl.when(is_tail)
            def _():
                row0 = pl.program_id(0) * tile_rows
                rows = jax.lax.broadcasted_iota(jnp.int32, (tile_rows, c), 0) + row0
                out_ref[...] = _partial_sum(jnp.where(rows < n_rows, val, 0.0))

            @pl.when(jnp.logical_not(is_tail))
            def _():
                out_ref[...] = _partial_sum(val)

    return kernel


@jax.jit
def craft_loss(gt_region, gt_affinity, pred_region, pred_affinity, conf_map):
    total = gt_region.size                    # true element count for the mean
    w = gt_region.shape[-1]
    n_rows, c = _choose_layout(total, w)

    # Contiguous reshape: metadata only, no extra HBM pass.
    args = tuple(
        a.reshape(n_rows, c)
        for a in (gt_region, gt_affinity, pred_region, pred_affinity, conf_map)
    )

    tile_rows = _choose_tile_rows(n_rows, c)
    num_blocks = pl.cdiv(n_rows, tile_rows)

    in_spec = pl.BlockSpec((tile_rows, c), lambda i: (i, 0))
    out_spec = pl.BlockSpec((1, c), lambda i: (i, 0))

    partials = pl.pallas_call(
        _make_loss_kernel(n_rows, tile_rows, c, num_blocks),
        out_shape=jax.ShapeDtypeStruct((num_blocks, c), jnp.float32),
        grid=(num_blocks,),
        in_specs=[in_spec] * 5,
        out_specs=out_spec,
        compiler_params=pltpu.CompilerParams(
            dimension_semantics=("parallel",),   # independent blocks -> megacore-safe
            vmem_limit_bytes=_VMEM_LIMIT_BYTES,
        ),
    )(*args)

    # Tiny finish: cross-lane + cross-block reduce, then the mean.
    return jnp.sum(partials) / jnp.float32(total)


def _reference(gt_region, gt_affinity, pred_region, pred_affinity, conf_map):
    return jnp.mean(
        ((gt_region - pred_region) ** 2 + (gt_affinity - pred_affinity) ** 2) * conf_map
    )


if __name__ == "__main__":
    key = jax.random.PRNGKey(0)
    ks = jax.random.split(key, 5)
    B, H, W = 2, 16, 16  # small CRAFT-style score maps

    gt_region = jax.random.uniform(ks[0], (B, H, W), dtype=jnp.float32)
    gt_affinity = jax.random.uniform(ks[1], (B, H, W), dtype=jnp.float32)
    pred_region = jax.random.uniform(ks[2], (B, H, W), dtype=jnp.float32)
    pred_affinity = jax.random.uniform(ks[3], (B, H, W), dtype=jnp.float32)
    conf_map = jax.random.uniform(ks[4], (B, H, W), dtype=jnp.float32)

    out = craft_loss(gt_region, gt_affinity, pred_region, pred_affinity, conf_map)
    out = jax.block_until_ready(out)

    ref = _reference(gt_region, gt_affinity, pred_region, pred_affinity, conf_map)
    assert jnp.allclose(out, ref, rtol=1e-5, atol=1e-6), (out, ref)

    print("KERNEL_OK")
</pallas_src>

<mosaic_0001>
module attributes {stable_mosaic.version = 11 : i64} {
  func.func @kernel(%arg0: i32, %arg1: memref<1x512xf32, #tpu.memory_space<vmem>>, %arg2: memref<1x512xf32, #tpu.memory_space<vmem>>, %arg3: memref<1x512xf32, #tpu.memory_space<vmem>>, %arg4: memref<1x512xf32, #tpu.memory_space<vmem>>, %arg5: memref<1x512xf32, #tpu.memory_space<vmem>>, %arg6: memref<1x512xf32, #tpu.memory_space<vmem>>) attributes {dimension_semantics = [#tpu.dimension_semantics<parallel>], iteration_bounds = array<i64: 1>, scalar_prefetch = 0 : i64, scratch_operands = 0 : i64, tpu.core_type = #tpu.core_type<tc>, window_params = [{transform_indices = @transform_0, window_bounds = array<i64: 1, 512>}, {transform_indices = @transform_1, window_bounds = array<i64: 1, 512>}, {transform_indices = @transform_2, window_bounds = array<i64: 1, 512>}, {transform_indices = @transform_3, window_bounds = array<i64: 1, 512>}, {transform_indices = @transform_4, window_bounds = array<i64: 1, 512>}, {transform_indices = @transform_5, window_bounds = array<i64: 1, 512>}]} {
    %c0 = arith.constant 0 : index
    %c0_0 = arith.constant 0 : index
    %0 = vector.load %arg1[%c0, %c0_0] : memref<1x512xf32, #tpu.memory_space<vmem>>, vector<1x512xf32>
    %c0_1 = arith.constant 0 : index
    %c0_2 = arith.constant 0 : index
    %1 = vector.load %arg2[%c0_1, %c0_2] : memref<1x512xf32, #tpu.memory_space<vmem>>, vector<1x512xf32>
    %c0_3 = arith.constant 0 : index
    %c0_4 = arith.constant 0 : index
    %2 = vector.load %arg3[%c0_3, %c0_4] : memref<1x512xf32, #tpu.memory_space<vmem>>, vector<1x512xf32>
    %c0_5 = arith.constant 0 : index
    %c0_6 = arith.constant 0 : index
    %3 = vector.load %arg4[%c0_5, %c0_6] : memref<1x512xf32, #tpu.memory_space<vmem>>, vector<1x512xf32>
    %c0_7 = arith.constant 0 : index
    %c0_8 = arith.constant 0 : index
    %4 = vector.load %arg5[%c0_7, %c0_8] : memref<1x512xf32, #tpu.memory_space<vmem>>, vector<1x512xf32>
    %5 = arith.subf %0, %2 : vector<1x512xf32>
    %6 = arith.subf %1, %3 : vector<1x512xf32>
    %7 = arith.mulf %5, %5 : vector<1x512xf32>
    %8 = arith.mulf %6, %6 : vector<1x512xf32>
    %9 = arith.addf %7, %8 : vector<1x512xf32>
    %10 = arith.mulf %9, %4 : vector<1x512xf32>
    %cst = arith.constant dense<0.000000e+00> : vector<512xf32>
    %11 = vector.multi_reduction <add>, %10, %cst [0] : vector<1x512xf32> to vector<512xf32>
    %12 = vector.shape_cast %11 : vector<512xf32> to vector<1x512xf32>
    %c0_9 = arith.constant 0 : index
    %c0_10 = arith.constant 0 : index
    %13 = vector.load %arg6[%c0_9, %c0_10] : memref<1x512xf32, #tpu.memory_space<vmem>>, vector<1x512xf32>
    tpu.vector_store %arg6[%c0_9, %c0_10], %12 {strides = array<i32>} : memref<1x512xf32, #tpu.memory_space<vmem>>, vector<1x512xf32>,
    return
  }
  func.func @transform_0(%arg0: i32) -> (i32, i32) {
    %c0_i32 = arith.constant 0 : i32
    %c0_i32_0 = arith.constant 0 : i32
    return %arg0, %c0_i32 : i32, i32
  }
  func.func @transform_1(%arg0: i32) -> (i32, i32) {
    %c0_i32 = arith.constant 0 : i32
    %c0_i32_0 = arith.constant 0 : i32
    return %arg0, %c0_i32 : i32, i32
  }
  func.func @transform_2(%arg0: i32) -> (i32, i32) {
    %c0_i32 = arith.constant 0 : i32
    %c0_i32_0 = arith.constant 0 : i32
    return %arg0, %c0_i32 : i32, i32
  }
  func.func @transform_3(%arg0: i32) -> (i32, i32) {
    %c0_i32 = arith.constant 0 : i32
    %c0_i32_0 = arith.constant 0 : i32
    return %arg0, %c0_i32 : i32, i32
  }
  func.func @transform_4(%arg0: i32) -> (i32, i32) {
    %c0_i32 = arith.constant 0 : i32
    %c0_i32_0 = arith.constant 0 : i32
    return %arg0, %c0_i32 : i32, i32
  }
  func.func @transform_5(%arg0: i32) -> (i32, i32) {
    %c0_i32 = arith.constant 0 : i32
    %c0_i32_0 = arith.constant 0 : i32
    return %arg0, %c0_i32 : i32, i32
  }
}

</mosaic_0001>

<llo_original>
// kernel: craft_loss.1
$region0: #{craft_loss.1}
  #allocation0 [shape = 'u32[]', space=smem, size = 0x4, offset = 0x4, fixed_abs, tag = 'smem constant byte address 0x4 - core index']
  #allocation1 [shape = 'u32[144,128]{1,0:T(1,128)}', space=vmem, size = 0x12000, scoped, tag = 'internal scratch']
  %s0 = inlined_call_operand.vmem [shape: f32[1,512], index: 0, kind: input, shape index: {}]
  %s1 = inlined_call_operand.vmem [shape: f32[1,512], index: 1, kind: input, shape index: {}]
  %s2 = inlined_call_operand.vmem [shape: f32[1,512], index: 2, kind: input, shape index: {}]
  %s3 = inlined_call_operand.vmem [shape: f32[1,512], index: 3, kind: input, shape index: {}]
  %s4 = inlined_call_operand.vmem [shape: f32[1,512], index: 4, kind: input, shape index: {}]
  %s5 = inlined_call_operand.vmem [shape: f32[1,512], index: 5, kind: output, shape index: {}]
  %s6 = sld [smem:[#allocation0]]
  $region30: #{craft_loss.1} parent=0
    _
  %s8 = ssub.s32 1, %s6
  %s9 = scalar_select 0, %s8, %s6
  // Predicated region
  $region2: #{craft_loss.1} parent=0 // pred_check
    _
  $region3: #{craft_loss.1} parent=0 // pred_check_branch
    %11 = sbr.rel (0) target = $region5
  $region4: #{craft_loss.1} parent=0 // pred_region
    _
  $region5: #{craft_loss.1} parent=0 // pred_fallthru
    _
  // Predicated region
  $region6: #{craft_loss.1} parent=0 // pred_check
    _
  $region7: #{craft_loss.1} parent=0 // pred_check_branch
    %13 = sbr.rel (0) target = $region9
  $region8: #{craft_loss.1} parent=0 // pred_region
    _
  $region9: #{craft_loss.1} parent=0 // pred_fallthru
    _
  // Predicated region
  $region10: #{craft_loss.1} parent=0 // pred_check
    _
  $region11: #{craft_loss.1} parent=0 // pred_check_branch
    %15 = sbr.rel (0) target = $region13
  $region12: #{craft_loss.1} parent=0 // pred_region
    _
  $region13: #{craft_loss.1} parent=0 // pred_fallthru
    _
  // Predicated region
  $region14: #{craft_loss.1} parent=0 // pred_check
    _
  $region15: #{craft_loss.1} parent=0 // pred_check_branch
    %17 = sbr.rel (0) target = $region17
  $region16: #{craft_loss.1} parent=0 // pred_region
    _
  $region17: #{craft_loss.1} parent=0 // pred_fallthru
    _
  // Predicated region
  $region18: #{craft_loss.1} parent=0 // pred_check
    _
  $region19: #{craft_loss.1} parent=0 // pred_check_branch
    %19 = sbr.rel (0) target = $region21
  $region20: #{craft_loss.1} parent=0 // pred_region
    _
  $region21: #{craft_loss.1} parent=0 // pred_fallthru
    _
  %v20 = vld [vmem:[%s0] sm:$0xf]
  %v21 = vld [vmem:[%s1] sm:$0xf]
  %v22 = vld [vmem:[%s2] sm:$0xf]
  %v23 = vld [vmem:[%s3] sm:$0xf]
  %v24 = vld [vmem:[%s4] sm:$0xf]
  %v25 = vsub.f32 %v20, %v22
  %v26 = vsub.f32 %v21, %v23
  %v27 = vmul.f32 %v25, %v25
  %v28 = vmul.f32 %v26, %v26
  %v29 = vadd.f32 %v27, %v28
  %v30 = vmul.f32 %v29, %v24
  %v31 = vadd.f32 %v30, 0.0
  %v32 = vlaneseq
  %vm33 = vcmp.ge.s32.totalorder %v32, 0
  %vm34 = vcmp.lt.s32.totalorder %v32, 512
  %vm35 = vmand %vm33, %vm34
  %36 = vst.msk [vmem:[%s5] sm:$0xf] %vm35, %v31
  // Predicated region
  $region22: #{craft_loss.1} parent=0 // pred_check
    _
  $region23: #{craft_loss.1} parent=0 // pred_check_branch
    %38 = sbr.rel (0) target = $region25
  $region24: #{craft_loss.1} parent=0 // pred_region
    _
  $region25: #{craft_loss.1} parent=0 // pred_fallthru
    _
  // Predicated region
  $region26: #{craft_loss.1} parent=0 // pred_check
    _
  $region27: #{craft_loss.1} parent=0 // pred_check_branch
    %40 = sbr.rel (0) target = $region29
  $region28: #{craft_loss.1} parent=0 // pred_region
    _
  $region29: #{craft_loss.1} parent=0 // pred_fallthru
    _

</llo_original>
